<compile_context>
chip_gen: v7x
topology: tpu7x:2x2x1
jax: 0.10.0
libtpu: 0.0.40
codegen_flags: <defaults>
</compile_context>

<pallas_src>
import functools

import jax
import jax.numpy as jnp
import numpy as np
from jax import lax
from jax.experimental import pallas as pl
from jax.experimental.pallas import tpu as pltpu


def _round_up(v, m):
    return (v + m - 1) // m * m


def _vae_kernel(x_ref, h_ref, wstack_ref, w4_ref, bias_ref,
                recon_ref, gauss_ref, *,
                d_in, cond, hid, gpad, o_whh, o_w1x, o_w2, o_w3z):
    x = x_ref[...]
    h = h_ref[...]

    # --- VAEEncoder ---
    # F.normalize(x) = x / max(||x||_2, 1e-12) == x * rsqrt(max(||x||^2, 1e-24))
    sumsq = jnp.sum(x * x, axis=-1, keepdims=True)
    xn = x * lax.rsqrt(jnp.maximum(sumsq, 1e-24))
    # TODO(synk): Dropout(0.5) and reparameterization noise are identity in eval mode.

    wdt = wstack_ref.dtype

    # Static, aligned slices of the packed weight stack (zero-cost ref views).
    w_hh = wstack_ref[o_whh:o_whh + cond, 0:2 * hid]   # [w1h | w3h]
    w1x = wstack_ref[o_w1x:o_w1x + d_in, 0:hid]
    w2 = wstack_ref[o_w2:o_w2 + hid, 0:gpad]           # cols >= 2*latent are zero
    w3z = wstack_ref[o_w3z:o_w3z + gpad, 0:hid]        # rows >= latent are zero

    b1 = bias_ref[0:1, 0:hid]
    b2 = bias_ref[1:2, 0:gpad]
    b3 = bias_ref[2:3, 0:hid]
    b4 = bias_ref[3:4, 0:d_in]

    hc = h.astype(wdt)

    # Fused h-projection for encoder layer 1 and decoder layer 1 (128 N lanes).
    hproj = jnp.dot(hc, w_hh, preferred_element_type=jnp.float32)   # [tb, 2*hid]

    # layer 1: cat([xn, h]) @ W1 + b1 == xn @ W1x + h @ W1h + b1 ; tanh
    h1 = jnp.tanh(
        jnp.dot(xn.astype(wdt), w1x, preferred_element_type=jnp.float32)
        + hproj[:, :hid] + b1)

    # layer 2: fused, lane-dense gaussian head [tb, gpad] ([mu | logvar | 0-pad])
    g = jnp.dot(h1.astype(wdt), w2, preferred_element_type=jnp.float32) + b2
    gauss_ref[...] = g.astype(gauss_ref.dtype)

    # --- VAEDecoder ---
    # reparam (eval): z = mu. Instead of slicing g, feed the full g into a
    # zero-row-padded w3z -> identical result, no sub-vreg lane extract.
    d1 = jnp.tanh(
        jnp.dot(g.astype(wdt), w3z, preferred_element_type=jnp.float32)
        + hproj[:, hid:2 * hid] + b3)

    recon_ref[...] = (
        jnp.dot(d1.astype(wdt), w4_ref[...], preferred_element_type=jnp.float32)
        + b4).astype(recon_ref.dtype)


def vae_rnn_rec_forward(x, h, packed, dims, condition_size):
    B, d_in = x.shape
    hid = dims[1]
    latent = dims[-1]
    cond = condition_size
    gpad = packed["gpad"]
    offs = packed["offsets"]
    wstack, w4, bias = packed["wstack"], packed["w4"], packed["bias"]

    # Batch tiling: big tiles (up to 1024), cdiv grid via row padding, and a tb
    # cap so the grid has >=2 steps whenever B allows (v7x 2-TC sharding).
    B8 = _round_up(B, 8)
    target = max(8, min(1024, _round_up(max(B8 // 2, 8), 8)))
    tb = 8
    for cand in (1024, 512, 256, 128, 64, 32, 16, 8):
        if cand <= target:
            tb = cand
            break
    B_pad = _round_up(B8, tb)
    if B_pad != B:
        pad = B_pad - B
        x = jnp.pad(x, ((0, pad), (0, 0)))
        h = jnp.pad(h, ((0, pad), (0, 0)))
    grid = (B_pad // tb,)

    kern = functools.partial(
        _vae_kernel, d_in=d_in, cond=cond, hid=hid, gpad=gpad,
        o_whh=offs["whh"], o_w1x=offs["w1x"], o_w2=offs["w2"], o_w3z=offs["w3z"])

    flops = 2 * B_pad * (cond * 2 * hid + d_in * hid + hid * gpad
                         + gpad * hid + hid * d_in)
    transcendentals = 2 * B_pad * hid + B_pad
    in_bytes = sum(int(a.size) * a.dtype.itemsize for a in (x, h, wstack, w4, bias))
    out_bytes = (B_pad * d_in + B_pad * gpad) * 4
    cost = pl.CostEstimate(flops=int(flops),
                           transcendentals=int(transcendentals),
                           bytes_accessed=int(in_bytes + out_bytes))

    grid_spec = pltpu.PrefetchScalarGridSpec(
        num_scalar_prefetch=0,
        grid=grid,
        in_specs=[
            pl.BlockSpec((tb, d_in), lambda i: (i, 0)),       # x
            pl.BlockSpec((tb, cond), lambda i: (i, 0)),       # h
            pl.BlockSpec(wstack.shape, lambda i: (0, 0)),     # packed small weights
            pl.BlockSpec(w4.shape, lambda i: (0, 0)),         # decoder output weight
            pl.BlockSpec(bias.shape, lambda i: (0, 0)),       # packed biases
        ],
        out_specs=(
            pl.BlockSpec((tb, d_in), lambda i: (i, 0)),       # recon_x
            pl.BlockSpec((tb, gpad), lambda i: (i, 0)),       # [mu | logvar | pad]
        ),
    )

    recon, gauss = pl.pallas_call(
        kern,
        out_shape=(jax.ShapeDtypeStruct((B_pad, d_in), jnp.float32),
                   jax.ShapeDtypeStruct((B_pad, gpad), jnp.float32)),
        grid_spec=grid_spec,
        compiler_params=pltpu.CompilerParams(
            dimension_semantics=("parallel",)),
        cost_estimate=cost,
    )(x, h, wstack, w4, bias)

    recon = recon[:B]
    mu = gauss[:B, :latent]
    logvar = gauss[:B, latent:2 * latent]
    return recon, mu, logvar


def _xavier_like(key, out_f, in_f):
    # matches init_weights(): weight ~ N(0, sqrt(2/(fan_in+fan_out))), bias ~ N(0, 0.001)
    kw, kb = jax.random.split(key)
    std = np.sqrt(2.0 / (in_f + out_f))
    w = std * jax.random.normal(kw, (out_f, in_f), jnp.float32)  # PyTorch [out, in]
    b = 0.001 * jax.random.normal(kb, (out_f,), jnp.float32)
    return w, b


def make_params(key, dims, condition_size):
    # VAEEncoder: d = dims.copy(); d[0] += cond; d[-1] *= 2
    d_enc = list(dims)
    d_enc[0] += condition_size
    d_enc[-1] *= 2
    # VAEDecoder: d = dims[::-1].copy(); d[0] += cond
    d_dec = list(dims[::-1])
    d_dec[0] += condition_size

    latent = dims[-1]
    d_in = dims[0]
    k1, k2, k3, k4 = jax.random.split(key, 4)

    w1, b1 = _xavier_like(k1, d_enc[1], d_enc[0])   # (hid, D_in+cond)
    w2, b2 = _xavier_like(k2, d_enc[2], d_enc[1])   # (2*latent, hid)
    w3, b3 = _xavier_like(k3, d_dec[1], d_dec[0])   # (hid, latent+cond)
    w4, b4 = _xavier_like(k4, d_dec[2], d_dec[1])   # (D_in, hid)

    w1_t, w2_t, w3_t, w4_t = w1.T, w2.T, w3.T, w4.T  # [in, out] layout
    return {
        "w1x": w1_t[:d_in, :], "w1h": w1_t[d_in:, :], "b1": b1[None, :],
        "w2": w2_t, "b2": b2[None, :],
        "w3z": w3_t[:latent, :], "w3h": w3_t[latent:, :], "b3": b3[None, :],
        "w4": w4_t, "b4": b4[None, :],
    }


def pack_params(logical, dims, condition_size, weight_dtype=jnp.float32):
    """Pack the small weights into one lane-dense row-stack + one bias buffer.

    Layout of wstack (all blocks zero-padded to `sw` lanes, rows 8-aligned):
      rows [o_whh, +cond)  : [w1h | w3h]            (cond, 2*hid)
      rows [o_w1x, +d_in)  : w1x                    (d_in, hid)
      rows [o_w2,  +hid)   : w2 padded to gpad cols (hid, gpad)
      rows [o_w3z, +gpad)  : w3z padded to gpad rows (gpad, hid), rows>=latent are 0
    """
    d_in, hid, latent = dims[0], dims[1], dims[-1]
    cond = condition_size
    gpad = _round_up(2 * latent, 128)                 # lane-dense gaussian width
    sw = _round_up(max(2 * hid, gpad, hid), 128)      # stack lane width

    whh = jnp.concatenate([logical["w1h"], logical["w3h"]], axis=1)  # (cond, 2*hid)

    blocks = []
    offsets = {}
    row = 0
    for name, rows_real, mat in (
            ("whh", cond, whh),
            ("w1x", d_in, logical["w1x"]),
            ("w2", hid, logical["w2"]),
            ("w3z", gpad, logical["w3z"])):
        offsets[name] = row
        blk = jnp.zeros((_round_up(rows_real, 8), sw), jnp.float32)
        blk = blk.at[:mat.shape[0], :mat.shape[1]].set(mat)
        blocks.append(blk)
        row += blk.shape[0]
    wstack = jnp.concatenate(blocks, axis=0).astype(weight_dtype)

    bw = _round_up(max(hid, gpad, d_in), 128)
    bias = jnp.zeros((4, bw), jnp.float32)
    bias = bias.at[0, :hid].set(logical["b1"][0])
    bias = bias.at[1, :2 * latent].set(logical["b2"][0])
    bias = bias.at[2, :hid].set(logical["b3"][0])
    bias = bias.at[3, :d_in].set(logical["b4"][0])

    return {"wstack": wstack,
            "w4": logical["w4"].astype(weight_dtype),
            "bias": bias,
            "gpad": gpad,
            "offsets": offsets}


def reference_forward(x, h, p):
    # pure-JAX reference reproducing the PyTorch eval-mode forward
    norm = jnp.sqrt(jnp.sum(x * x, axis=-1, keepdims=True))
    xn = x / jnp.maximum(norm, 1e-12)
    h1 = jnp.tanh(xn @ p["w1x"] + h @ p["w1h"] + p["b1"])
    g = h1 @ p["w2"] + p["b2"]
    latent = p["w2"].shape[1] // 2
    mu, logvar = g[:, :latent], g[:, latent:]
    z = mu
    d1 = jnp.tanh(z @ p["w3z"] + h @ p["w3h"] + p["b3"])
    recon = d1 @ p["w4"] + p["b4"]
    return recon, mu, logvar


if __name__ == "__main__":
    # shapes consistent with the module:
    #   dims = [128, 64, 32]  (input -> hidden -> latent), condition_size = 16, batch = 8
    dims = [128, 64, 32]
    condition_size = 16
    B = 8

    key = jax.random.PRNGKey(0)
    kx, kh, kp = jax.random.split(key, 3)
    x = jax.random.normal(kx, (B, dims[0]), jnp.float32)          # user-item vector
    h = jax.random.normal(kh, (B, condition_size), jnp.float32)   # condition (RNN output)

    logical = make_params(kp, dims, condition_size)
    # weight_dtype=jnp.bfloat16 is the v6e/v7x production option (halves weight
    # DMA/VMEM, f32 accumulation preserved); keep f32 here for a tight check.
    packed = pack_params(logical, dims, condition_size, weight_dtype=jnp.float32)

    recon_x, mu, logvar = vae_rnn_rec_forward(x, h, packed, dims, condition_size)
    jax.block_until_ready((recon_x, mu, logvar))

    r_ref, mu_ref, lv_ref = reference_forward(x, h, logical)
    assert jnp.allclose(recon_x, r_ref, atol=1e-4, rtol=1e-4), \
        float(jnp.max(jnp.abs(recon_x - r_ref)))
    assert jnp.allclose(mu, mu_ref, atol=1e-4, rtol=1e-4)
    assert jnp.allclose(logvar, lv_ref, atol=1e-4, rtol=1e-4)

    print("KERNEL_OK")
</pallas_src>

<mosaic_0001>
module attributes {stable_mosaic.version = 11 : i64} {
  func.func @_vae_kernel(%arg0: i32, %arg1: memref<8x128xf32, #tpu.memory_space<vmem>>, %arg2: memref<8x16xf32, #tpu.memory_space<vmem>>, %arg3: memref<336x128xf32, #tpu.memory_space<vmem>>, %arg4: memref<64x128xf32, #tpu.memory_space<vmem>>, %arg5: memref<4x128xf32, #tpu.memory_space<vmem>>, %arg6: memref<8x128xf32, #tpu.memory_space<vmem>>, %arg7: memref<8x128xf32, #tpu.memory_space<vmem>>) attributes {dimension_semantics = [#tpu.dimension_semantics<parallel>], iteration_bounds = array<i64: 1>, scalar_prefetch = 0 : i64, scratch_operands = 0 : i64, tpu.core_type = #tpu.core_type<tc>, window_params = [{transform_indices = @transform_0, window_bounds = array<i64: 8, 128>}, {transform_indices = @transform_1, window_bounds = array<i64: 8, 16>}, {pipeline_mode = #tpu.pipeline_mode<synchronous>, transform_indices = @transform_2, window_bounds = array<i64: 336, 128>}, {pipeline_mode = #tpu.pipeline_mode<synchronous>, transform_indices = @transform_3, window_bounds = array<i64: 64, 128>}, {pipeline_mode = #tpu.pipeline_mode<synchronous>, transform_indices = @transform_4, window_bounds = array<i64: 4, 128>}, {transform_indices = @transform_5, window_bounds = array<i64: 8, 128>}, {transform_indices = @transform_6, window_bounds = array<i64: 8, 128>}]} {
    %c0 = arith.constant 0 : index
    %c0_0 = arith.constant 0 : index
    %0 = vector.load %arg1[%c0, %c0_0] : memref<8x128xf32, #tpu.memory_space<vmem>>, vector<8x128xf32>
    %c0_1 = arith.constant 0 : index
    %c0_2 = arith.constant 0 : index
    %1 = vector.load %arg2[%c0_1, %c0_2] : memref<8x16xf32, #tpu.memory_space<vmem>>, vector<8x16xf32>
    %2 = arith.mulf %0, %0 : vector<8x128xf32>
    %cst = arith.constant dense<0.000000e+00> : vector<8xf32>
    %3 = vector.multi_reduction <add>, %2, %cst [1] : vector<8x128xf32> to vector<8xf32>
    %4 = vector.shape_cast %3 : vector<8xf32> to vector<8x1xf32>
    %cst_3 = arith.constant 1.000000e-24 : f32
    %5 = vector.broadcast %cst_3 : f32 to vector<8x1xf32>
    %6 = arith.maximumf %4, %5 : vector<8x1xf32>
    %7 = math.rsqrt %6 : vector<8x1xf32>
    %8 = vector.broadcast %7 : vector<8x1xf32> to vector<8x128xf32>
    %9 = arith.mulf %0, %8 : vector<8x128xf32>
    %c0_4 = arith.constant 0 : index
    %c0_5 = arith.constant 0 : index
    %10 = vector.load %arg3[%c0_4, %c0_5] : memref<336x128xf32, #tpu.memory_space<vmem>>, vector<16x128xf32>
    %c16 = arith.constant 16 : index
    %c0_6 = arith.constant 0 : index
    %11 = vector.load %arg3[%c16, %c0_6] : memref<336x128xf32, #tpu.memory_space<vmem>>, vector<128x64xf32>
    %c144 = arith.constant 144 : index
    %c0_7 = arith.constant 0 : index
    %12 = vector.load %arg3[%c144, %c0_7] : memref<336x128xf32, #tpu.memory_space<vmem>>, vector<64x128xf32>
    %c208 = arith.constant 208 : index
    %c0_8 = arith.constant 0 : index
    %13 = vector.load %arg3[%c208, %c0_8] : memref<336x128xf32, #tpu.memory_space<vmem>>, vector<128x64xf32>
    %c0_9 = arith.constant 0 : index
    %c0_10 = arith.constant 0 : index
    %14 = vector.load %arg5[%c0_9, %c0_10] : memref<4x128xf32, #tpu.memory_space<vmem>>, vector<1x64xf32>
    %c1 = arith.constant 1 : index
    %c0_11 = arith.constant 0 : index
    %15 = vector.load %arg5[%c1, %c0_11] : memref<4x128xf32, #tpu.memory_space<vmem>>, vector<1x128xf32>
    %c2 = arith.constant 2 : index
    %c0_12 = arith.constant 0 : index
    %16 = vector.load %arg5[%c2, %c0_12] : memref<4x128xf32, #tpu.memory_space<vmem>>, vector<1x64xf32>
    %c3 = arith.constant 3 : index
    %c0_13 = arith.constant 0 : index
    %17 = vector.load %arg5[%c3, %c0_13] : memref<4x128xf32, #tpu.memory_space<vmem>>, vector<1x128xf32>
    %cst_14 = arith.constant dense<0.000000e+00> : vector<8x128xf32>
    %18 = tpu.matmul %1, %10, %cst_14 {dimension_numbers = #tpu.dot_dimension_numbers<[1], [0], [0], [1], [0, 0, 1, 1], [], []>} : vector<8x16xf32>, vector<16x128xf32>, vector<8x128xf32> -> vector<8x128xf32>
    %cst_15 = arith.constant dense<0.000000e+00> : vector<8x64xf32>
    %19 = tpu.matmul %9, %11, %cst_15 {dimension_numbers = #tpu.dot_dimension_numbers<[1], [0], [0], [1], [0, 0, 1, 1], [], []>} : vector<8x128xf32>, vector<128x64xf32>, vector<8x64xf32> -> vector<8x64xf32>
    %20 = vector.extract_strided_slice %18 {offsets = [0, 0], sizes = [8, 64], strides = [1, 1]} : vector<8x128xf32> to vector<8x64xf32>
    %21 = arith.addf %19, %20 : vector<8x64xf32>
    %22 = vector.broadcast %14 : vector<1x64xf32> to vector<8x64xf32>
    %23 = arith.addf %21, %22 : vector<8x64xf32>
    %24 = math.tanh %23 : vector<8x64xf32>
    %cst_16 = arith.constant dense<0.000000e+00> : vector<8x128xf32>
    %25 = tpu.matmul %24, %12, %cst_16 {dimension_numbers = #tpu.dot_dimension_numbers<[1], [0], [0], [1], [0, 0, 1, 1], [], []>} : vector<8x64xf32>, vector<64x128xf32>, vector<8x128xf32> -> vector<8x128xf32>
    %26 = vector.broadcast %15 : vector<1x128xf32> to vector<8x128xf32>
    %27 = arith.addf %25, %26 : vector<8x128xf32>
    %c0_17 = arith.constant 0 : index
    %c0_18 = arith.constant 0 : index
    %28 = vector.load %arg7[%c0_17, %c0_18] : memref<8x128xf32, #tpu.memory_space<vmem>>, vector<8x128xf32>
    tpu.vector_store %arg7[%c0_17, %c0_18], %27 {strides = array<i32>} : memref<8x128xf32, #tpu.memory_space<vmem>>, vector<8x128xf32>,
    %cst_19 = arith.constant dense<0.000000e+00> : vector<8x64xf32>
    %29 = tpu.matmul %27, %13, %cst_19 {dimension_numbers = #tpu.dot_dimension_numbers<[1], [0], [0], [1], [0, 0, 1, 1], [], []>} : vector<8x128xf32>, vector<128x64xf32>, vector<8x64xf32> -> vector<8x64xf32>
    %30 = vector.extract_strided_slice %18 {offsets = [0, 64], sizes = [8, 64], strides = [1, 1]} : vector<8x128xf32> to vector<8x64xf32>
    %31 = arith.addf %29, %30 : vector<8x64xf32>
    %32 = vector.broadcast %16 : vector<1x64xf32> to vector<8x64xf32>
    %33 = arith.addf %31, %32 : vector<8x64xf32>
    %34 = math.tanh %33 : vector<8x64xf32>
    %c0_20 = arith.constant 0 : index
    %c0_21 = arith.constant 0 : index
    %35 = vector.load %arg4[%c0_20, %c0_21] : memref<64x128xf32, #tpu.memory_space<vmem>>, vector<64x128xf32>
    %cst_22 = arith.constant dense<0.000000e+00> : vector<8x128xf32>
    %36 = tpu.matmul %34, %35, %cst_22 {dimension_numbers = #tpu.dot_dimension_numbers<[1], [0], [0], [1], [0, 0, 1, 1], [], []>} : vector<8x64xf32>, vector<64x128xf32>, vector<8x128xf32> -> vector<8x128xf32>
    %37 = vector.broadcast %17 : vector<1x128xf32> to vector<8x128xf32>
    %38 = arith.addf %36, %37 : vector<8x128xf32>
    %c0_23 = arith.constant 0 : index
    %c0_24 = arith.constant 0 : index
    %39 = vector.load %arg6[%c0_23, %c0_24] : memref<8x128xf32, #tpu.memory_space<vmem>>, vector<8x128xf32>
    tpu.vector_store %arg6[%c0_23, %c0_24], %38 {strides = array<i32>} : memref<8x128xf32, #tpu.memory_space<vmem>>, vector<8x128xf32>,
    return
  }
  func.func @transform_0(%arg0: i32) -> (i32, i32) {
    %c0_i32 = arith.constant 0 : i32
    %c0_i32_0 = arith.constant 0 : i32
    return %arg0, %c0_i32 : i32, i32
  }
  func.func @transform_1(%arg0: i32) -> (i32, i32) {
    %c0_i32 = arith.constant 0 : i32
    %c0_i32_0 = arith.constant 0 : i32
    return %arg0, %c0_i32 : i32, i32
  }
  func.func @transform_2(%arg0: i32) -> (i32, i32) {
    %c0_i32 = arith.constant 0 : i32
    %c0_i32_0 = arith.constant 0 : i32
    %c0_i32_1 = arith.constant 0 : i32
    return %c0_i32, %c0_i32_0 : i32, i32
  }
  func.func @transform_3(%arg0: i32) -> (i32, i32) {
    %c0_i32 = arith.constant 0 : i32
    %c0_i32_0 = arith.constant 0 : i32
    %c0_i32_1 = arith.constant 0 : i32
    return %c0_i32, %c0_i32_0 : i32, i32
  }
  func.func @transform_4(%arg0: i32) -> (i32, i32) {
    %c0_i32 = arith.constant 0 : i32
    %c0_i32_0 = arith.constant 0 : i32
    %c0_i32_1 = arith.constant 0 : i32
    return %c0_i32, %c0_i32_0 : i32, i32
  }
  func.func @transform_5(%arg0: i32) -> (i32, i32) {
    %c0_i32 = arith.constant 0 : i32
    %c0_i32_0 = arith.constant 0 : i32
    return %arg0, %c0_i32 : i32, i32
  }
  func.func @transform_6(%arg0: i32) -> (i32, i32) {
    %c0_i32 = arith.constant 0 : i32
    %c0_i32_0 = arith.constant 0 : i32
    return %arg0, %c0_i32 : i32, i32
  }
}

</mosaic_0001>

<llo_original>
// kernel: tpu_custom_call.1
$region0: #{tpu_custom_call.1}
  #allocation0 [shape = 'u32[]', space=smem, size = 0x4, offset = 0x4, fixed_abs, tag = 'smem constant byte address 0x4 - core index']
  #allocation1 [shape = 'u32[144,128]{1,0:T(1,128)}', space=vmem, size = 0x12000, scoped, tag = 'internal scratch']
  %s0 = inlined_call_operand.hbm [shape: f32[8,128], index: 0, kind: input, shape index: {}]
  %s1 = inlined_call_operand.hbm [shape: f32[8,16], index: 1, kind: input, shape index: {}]
  %s2 = inlined_call_operand.hbm [shape: f32[336,128], index: 2, kind: input, shape index: {}]
  %s3 = inlined_call_operand.hbm [shape: f32[64,128], index: 3, kind: input, shape index: {}]
  %s4 = inlined_call_operand.vmem [shape: f32[4,128], index: 4, kind: input, shape index: {}]
  %s5 = inlined_call_operand.hbm [shape: f32[8,128], index: 5, kind: output, shape index: {0}]
  %s6 = inlined_call_operand.hbm [shape: f32[8,128], index: 6, kind: output, shape index: {1}]
  %7 = xla_tuple %s5, %s6
  %s8 = sld [smem:[#allocation0]]
  $region54: #{tpu_custom_call.1} parent=0
    _
  %s10 = ssub.s32 1, %s8
  %s11 = scalar_select 0, %s10, %s8
  $region1: #{tpu_custom_call.1} parent=0
    #allocation2 [shape = 'u8[4096]{0}', space=vmem, size = 0x1000, scoped, tag = 'input window, operand 0, single buffered']
    #allocation3 [shape = 's32[1]{0}', space=sflag, size = 0x4, scoped, tag = 'scoped memory for tpu_custom_call.1']
    #allocation4 [shape = 's32[1]{0}', space=sflag, size = 0x4, scoped, tag = 'scoped memory for tpu_custom_call.1']
    #allocation5 [shape = 'u8[4096]{0}', space=vmem, size = 0x1000, scoped, tag = 'input window, operand 1, single buffered']
    #allocation6 [shape = 's32[1]{0}', space=sflag, size = 0x4, scoped, tag = 'scoped memory for tpu_custom_call.1']
    #allocation7 [shape = 'u8[172032]{0}', space=vmem, size = 0x2a000, scoped, tag = 'input window, operand 2, single buffered']
    #allocation8 [shape = 'u8[32768]{0}', space=vmem, size = 0x8000, scoped, tag = 'input window, operand 3, single buffered']
    #allocation9 [shape = 's32[1]{0}', space=sflag, size = 0x4, scoped, tag = 'scoped memory for tpu_custom_call.1']
    #allocation10 [shape = 'u8[4096]{0}', space=vmem, size = 0x1000, scoped, tag = 'output window, operand 0, single buffered']
    #allocation11 [shape = 'u8[4096]{0}', space=vmem, size = 0x1000, scoped, tag = 'output window, operand 1, single buffered']
    #allocation12 [shape = 's32[1]{0}', space=sflag, size = 0x4, scoped, tag = 'scoped memory for tpu_custom_call.1']
    %12 = vsyncpa [#allocation3], 0
    %13 = vsyncpa [#allocation6], 0
    %14 = vsyncpa [#allocation9], 0
    %15 = vsyncpa [#allocation4], 0
    %16 = vsyncpa [#allocation12], 0
    // Predicated region
    $region2: #{tpu_custom_call.1} parent=1 // pred_check
      _
    $region3: #{tpu_custom_call.1} parent=1 // pred_check_branch
      %18 = sbr.rel (0) target = $region5
    $region4: #{tpu_custom_call.1} parent=1 // pred_region
      %s20 = ssub.s32 128, 128
      %21 = vsyncadd [#allocation3], %s20
      %s23 = sshll.u32 [#allocation2], 4
      %s24 = int_to_ptr.vmem [resolvable:$true] %s23
      %26 = dma.hbm_to_vmem [thread:$0]  %s0, 128, %s24, [#allocation3]
    $region5: #{tpu_custom_call.1} parent=1 // pred_fallthru
      _
    // Predicated region
    $region6: #{tpu_custom_call.1} parent=1 // pred_check
      _
    $region7: #{tpu_custom_call.1} parent=1 // pred_check_branch
      %28 = sbr.rel (0) target = $region9
    $region8: #{tpu_custom_call.1} parent=1 // pred_region
      %s30 = ssub.s32 128, 128
      %31 = vsyncadd [#allocation6], %s30
      %s33 = sshll.u32 [#allocation5], 4
      %s34 = int_to_ptr.vmem [resolvable:$true] %s33
      %36 = dma.hbm_to_vmem [thread:$0]  %s1, 128, %s34, [#allocation6]
    $region9: #{tpu_custom_call.1} parent=1 // pred_fallthru
      _
    // Predicated region
    $region10: #{tpu_custom_call.1} parent=1 // pred_check
      _
    $region11: #{tpu_custom_call.1} parent=1 // pred_check_branch
      %38 = sbr.rel (0) target = $region13
    $region12: #{tpu_custom_call.1} parent=1 // pred_region
      %s40 = ssub.s32 5376, 5376
      %41 = vsyncadd [#allocation6], %s40
      %s42 = sshll.u32 [#allocation7], 4
      %s43 = int_to_ptr.vmem [resolvable:$true] %s42
      %48 = dma.hbm_to_vmem [thread:$0]  %s2, 5376, %s43, [#allocation6], 128, 128, 8
    $region13: #{tpu_custom_call.1} parent=1 // pred_fallthru
      _
    // Predicated region
    $region14: #{tpu_custom_call.1} parent=1 // pred_check
      _
    $region15: #{tpu_custom_call.1} parent=1 // pred_check_branch
      %50 = sbr.rel (0) target = $region17
    $region16: #{tpu_custom_call.1} parent=1 // pred_region
      %s52 = ssub.s32 1024, 1024
      %53 = vsyncadd [#allocation9], %s52
      %s54 = sshll.u32 [#allocation8], 4
      %s55 = int_to_ptr.vmem [resolvable:$true] %s54
      %60 = dma.hbm_to_vmem [thread:$0]  %s3, 1024, %s55, [#allocation9], 128, 128, 8
    $region17: #{tpu_custom_call.1} parent=1 // pred_fallthru
      _
    // Predicated region
    $region18: #{tpu_custom_call.1} parent=1 // pred_check
      _
    $region19: #{tpu_custom_call.1} parent=1 // pred_check_branch
      %62 = sbr.rel (0) target = $region21
    $region20: #{tpu_custom_call.1} parent=1 // pred_region
      _
    $region21: #{tpu_custom_call.1} parent=1 // pred_fallthru
      _
    // Predicated region
    $region22: #{tpu_custom_call.1} parent=1 // pred_check
      _
    $region23: #{tpu_custom_call.1} parent=1 // pred_check_branch
      %64 = sbr.rel (0) target = $region25
    $region24: #{tpu_custom_call.1} parent=1 // pred_region
      %65 = dma.done [#allocation3], 128
    $region25: #{tpu_custom_call.1} parent=1 // pred_fallthru
      _
    // Predicated region
    $region26: #{tpu_custom_call.1} parent=1 // pred_check
      _
    $region27: #{tpu_custom_call.1} parent=1 // pred_check_branch
      %67 = sbr.rel (0) target = $region29
    $region28: #{tpu_custom_call.1} parent=1 // pred_region
      %68 = dma.done [#allocation6], 128
    $region29: #{tpu_custom_call.1} parent=1 // pred_fallthru
      _
    // Predicated region
    $region30: #{tpu_custom_call.1} parent=1 // pred_check
      _
    $region31: #{tpu_custom_call.1} parent=1 // pred_check_branch
      %70 = sbr.rel (0) target = $region33
    $region32: #{tpu_custom_call.1} parent=1 // pred_region
      %71 = dma.done [#allocation6], 5376
    $region33: #{tpu_custom_call.1} parent=1 // pred_fallthru
      _
    // Predicated region
    $region34: #{tpu_custom_call.1} parent=1 // pred_check
      _
    $region35: #{tpu_custom_call.1} parent=1 // pred_check_branch
      %73 = sbr.rel (0) target = $region37
    $region36: #{tpu_custom_call.1} parent=1 // pred_region
      %74 = dma.done [#allocation9], 1024
    $region37: #{tpu_custom_call.1} parent=1 // pred_fallthru
      _
    %v75 = vld [vmem:[#allocation2] sm:$0xff]
    %v76 = vld [vmem:[#allocation5] sm:$0xff]
    %v77 = vmul.f32 %v75, %v75
    %78 = vadd.xlane.f32.xlu0 %v77
    %v79 = vpop.xlane.xlu0 %78
    %v80 = vmax.f32 %v79, 1e-24
    %v81 = vrsqrt.pop %v80
    %v82 = vmul.f32 %v75, %v81
    %v83 = vld [vmem:[#allocation7] sm:$0xff]
    %v84 = vld [vmem:[#allocation7 + $0x8] sm:$0xff]
    %v85 = vld [vmem:[#allocation7 + $0x10] sm:$0xff]
    %v86 = vld [vmem:[#allocation7 + $0x18] sm:$0xff]
    %v87 = vld [vmem:[#allocation7 + $0x20] sm:$0xff]
    %v88 = vld [vmem:[#allocation7 + $0x28] sm:$0xff]
    %v89 = vld [vmem:[#allocation7 + $0x30] sm:$0xff]
    %v90 = vld [vmem:[#allocation7 + $0x38] sm:$0xff]
    %v91 = vld [vmem:[#allocation7 + $0x40] sm:$0xff]
    %v92 = vld [vmem:[#allocation7 + $0x48] sm:$0xff]
    %v93 = vld [vmem:[#allocation7 + $0x50] sm:$0xff]
    %v94 = vld [vmem:[#allocation7 + $0x58] sm:$0xff]
    %v95 = vld [vmem:[#allocation7 + $0x60] sm:$0xff]
    %v96 = vld [vmem:[#allocation7 + $0x68] sm:$0xff]
    %v97 = vld [vmem:[#allocation7 + $0x70] sm:$0xff]
    %v98 = vld [vmem:[#allocation7 + $0x78] sm:$0xff]
    %v99 = vld [vmem:[#allocation7 + $0x80] sm:$0xff]
    %v100 = vld [vmem:[#allocation7 + $0x88] sm:$0xff]
    %v101 = vld [vmem:[#allocation7 + $0x90] sm:$0xff]
    %v102 = vld [vmem:[#allocation7 + $0x98] sm:$0xff]
    %v103 = vld [vmem:[#allocation7 + $0xa0] sm:$0xff]
    %v104 = vld [vmem:[#allocation7 + $0xa8] sm:$0xff]
    %v105 = vld [vmem:[#allocation7 + $0xb0] sm:$0xff]
    %v106 = vld [vmem:[#allocation7 + $0xb8] sm:$0xff]
    %v107 = vld [vmem:[#allocation7 + $0xc0] sm:$0xff]
    %v108 = vld [vmem:[#allocation7 + $0xc8] sm:$0xff]
    %v109 = vld [vmem:[#allocation7 + $0xd0] sm:$0xff]
    %v110 = vld [vmem:[#allocation7 + $0xd8] sm:$0xff]
    %v111 = vld [vmem:[#allocation7 + $0xe0] sm:$0xff]
    %v112 = vld [vmem:[#allocation7 + $0xe8] sm:$0xff]
    %v113 = vld [vmem:[#allocation7 + $0xf0] sm:$0xff]
    %v114 = vld [vmem:[#allocation7 + $0xf8] sm:$0xff]
    %v115 = vld [vmem:[#allocation7 + $0x100] sm:$0xff]
    %v116 = vld [vmem:[#allocation7 + $0x108] sm:$0xff]
    %v117 = vld [vmem:[#allocation7 + $0x110] sm:$0xff]
    %v118 = vld [vmem:[#allocation7 + $0x118] sm:$0xff]
    %v119 = vld [vmem:[#allocation7 + $0x120] sm:$0xff]
    %v120 = vld [vmem:[#allocation7 + $0x128] sm:$0xff]
    %v121 = vld [vmem:[#allocation7 + $0x130] sm:$0xff]
    %v122 = vld [vmem:[#allocation7 + $0x138] sm:$0xff]
    %v123 = vld [vmem:[#allocation7 + $0x140] sm:$0xff]
    %v124 = vld [vmem:[#allocation7 + $0x148] sm:$0xff]
    %v125 = vld [vmem:[%s4] sm:$0x1]
    %v126 = vld [vmem:[%s4 + $0x1] sm:$0x1]
    %v127 = vld [vmem:[%s4 + $0x2] sm:$0x1]
    %v128 = vld [vmem:[%s4 + $0x3] sm:$0x1]
    %vm129 = vcmask 130048
    %v131 = vsel %vm129, %v76, 0
    %133 = vmatprep.subr.mxu0 0.0
    %134 = vmatpush1.msra.mxu0 %v83
    %135 = vmatprep.subr.mxu0 0.0
    %136 = vmatpush1.msra.mxu0 %v84
    %137 = vmatprep.subr.mxu0 0.0
    %138 = vmatpush1.msra.mxu0 0.0
    %139 = vmatprep.subr.mxu0 0.0
    %140 = vmatpush1.msra.mxu0 0.0
    %141 = vmatprep.subr.mxu0 0.0
    %142 = vmatpush1.msra.mxu0 0.0
    %143 = vmatprep.subr.mxu0 0.0
    %144 = vmatpush1.msra.mxu0 0.0
    %145 = vmatprep.subr.mxu0 0.0
    %146 = vmatpush1.msra.mxu0 0.0
    %147 = vmatprep.subr.mxu0 0.0
    %148 = vmatpush1.msra.mxu0 0.0
    %149 = vmatprep.subr.mxu0 0.0
    %150 = vmatpush1.msra.mxu0 0.0
    %151 = vmatprep.subr.mxu0 0.0
    %152 = vmatpush1.msra.mxu0 0.0
    %153 = vmatprep.subr.mxu0 0.0
    %154 = vmatpush1.msra.mxu0 0.0
    %155 = vmatprep.subr.mxu0 0.0
    %156 = vmatpush1.msra.mxu0 0.0
    %157 = vmatprep.subr.mxu0 0.0
    %158 = vmatpush1.msra.mxu0 0.0
    %159 = vmatprep.subr.mxu0 0.0
    %160 = vmatpush1.msra.mxu0 0.0
    %161 = vmatprep.subr.mxu0 0.0
    %162 = vmatpush1.msra.mxu0 0.0
    %163 = vmatprep.subr.mxu0 0.0
    %164 = vmatpush1.msra.mxu0 0.0
    %165 = vmatprep.subr.mxu0 0.0
    %166 = vmatpush1.msra.mxu0 0.0
    %167 = vmatprep.subr.mxu0 0.0
    %168 = vmatpush1.msra.mxu0 0.0
    %169 = vmatprep.subr.mxu0 0.0
    %170 = vmatpush1.msra.mxu0 0.0
    %171 = vmatprep.subr.mxu0 0.0
    %172 = vmatpush1.msra.mxu0 0.0
    %173 = vmatprep.subr.mxu0 0.0
    %174 = vmatpush1.msra.mxu0 0.0
    %175 = vmatprep.subr.mxu0 0.0
    %176 = vmatpush1.msra.mxu0 0.0
    %177 = vmatprep.subr.mxu0 0.0
    %178 = vmatpush1.msra.mxu0 0.0
    %179 = vmatprep.subr.mxu0 0.0
    %180 = vmatpush1.msra.mxu0 0.0
    %181 = vmatprep.subr.mxu0 0.0
    %182 = vmatpush1.msra.mxu0 0.0
    %183 = vmatprep.subr.mxu0 0.0
    %184 = vmatpush1.msra.mxu0 0.0
    %185 = vmatprep.subr.mxu0 0.0
    %186 = vmatpush1.msra.mxu0 0.0
    %187 = vmatprep.subr.mxu0 0.0
    %188 = vmatpush1.msra.mxu0 0.0
    %189 = vmatprep.subr.mxu0 0.0
    %190 = vmatpush1.msra.mxu0 0.0
    %191 = vmatprep.subr.mxu0 0.0
    %192 = vmatpush1.msra.mxu0 0.0
    %193 = vmatprep.subr.mxu0 0.0
    %194 = vmatpush1.msra.mxu0 0.0
    %195 = vmatprep.subr.mxu0 0.0
    %196 = vmatpush1.msra.mxu0 0.0
    %197 = vmatprep.mubr.f32.mxu0 0.0
    %198 = vmatmul.mubr.f32.gmra.mrb[0].mxu0 %v131
    %v199 = vpop.f32.mrb[0].mxu0
    %v200 = vadd.f32 0.0, %v199
    %v201 = vpop.f32.mrb[0].mxu0
    %202 = vdwg.mxu0
    %203 = vmatprep.subr.mxu0 0.0
    %204 = vmatpush1.msra.mxu0 %v85
    %205 = vmatprep.subr.mxu0 0.0
    %206 = vmatpush1.msra.mxu0 %v86
    %207 = vmatprep.subr.mxu0 0.0
    %208 = vmatpush1.msra.mxu0 %v87
    %209 = vmatprep.subr.mxu0 0.0
    %210 = vmatpush1.msra.mxu0 %v88
    %211 = vmatprep.subr.mxu0 0.0
    %212 = vmatpush1.msra.mxu0 %v89
    %213 = vmatprep.subr.mxu0 0.0
    %214 = vmatpush1.msra.mxu0 %v90
    %215 = vmatprep.subr.mxu0 0.0
    %216 = vmatpush1.msra.mxu0 %v91
    %217 = vmatprep.subr.mxu0 0.0
    %218 = vmatpush1.msra.mxu0 %v92
    %219 = vmatprep.subr.mxu0 0.0
    %220 = vmatpush1.msra.mxu0 %v93
    %221 = vmatprep.subr.mxu0 0.0
    %222 = vmatpush1.msra.mxu0 %v94
    %223 = vmatprep.subr.mxu0 0.0
    %224 = vmatpush1.msra.mxu0 %v95
    %225 = vmatprep.subr.mxu0 0.0
    %226 = vmatpush1.msra.mxu0 %v96
    %227 = vmatprep.subr.mxu0 0.0
    %228 = vmatpush1.msra.mxu0 %v97
    %229 = vmatprep.subr.mxu0 0.0
    %230 = vmatpush1.msra.mxu0 %v98
    %231 = vmatprep.subr.mxu0 0.0
    %232 = vmatpush1.msra.mxu0 %v99
    %233 = vmatprep.subr.mxu0 0.0
    %234 = vmatpush1.msra.mxu0 %v100
    %235 = vmatprep.subr.mxu0 0.0
    %236 = vmatpush1.msra.mxu0 0.0
    %237 = vmatprep.subr.mxu0 0.0
    %238 = vmatpush1.msra.mxu0 0.0
    %239 = vmatprep.subr.mxu0 0.0
    %240 = vmatpush1.msra.mxu0 0.0
    %241 = vmatprep.subr.mxu0 0.0
    %242 = vmatpush1.msra.mxu0 0.0
    %243 = vmatprep.subr.mxu0 0.0
    %244 = vmatpush1.msra.mxu0 0.0
    %245 = vmatprep.subr.mxu0 0.0
    %246 = vmatpush1.msra.mxu0 0.0
    %247 = vmatprep.subr.mxu0 0.0
    %248 = vmatpush1.msra.mxu0 0.0
    %249 = vmatprep.subr.mxu0 0.0
    %250 = vmatpush1.msra.mxu0 0.0
    %251 = vmatprep.subr.mxu0 0.0
    %252 = vmatpush1.msra.mxu0 0.0
    %253 = vmatprep.subr.mxu0 0.0
    %254 = vmatpush1.msra.mxu0 0.0
    %255 = vmatprep.subr.mxu0 0.0
    %256 = vmatpush1.msra.mxu0 0.0
    %257 = vmatprep.subr.mxu0 0.0
    %258 = vmatpush1.msra.mxu0 0.0
    %259 = vmatprep.subr.mxu0 0.0
    %260 = vmatpush1.msra.mxu0 0.0
    %261 = vmatprep.subr.mxu0 0.0
    %262 = vmatpush1.msra.mxu0 0.0
    %263 = vmatprep.subr.mxu0 0.0
    %264 = vmatpush1.msra.mxu0 0.0
    %265 = vmatprep.subr.mxu0 0.0
    %266 = vmatpush1.msra.mxu0 0.0
    %267 = vmatprep.mubr.f32.mxu0 0.0
    %268 = vmatmul.mubr.f32.gmra.mrb[0].mxu0 %v82
    %v269 = vpop.f32.mrb[0].mxu0
    %v270 = vadd.f32 %v200, %v269
    %v271 = vpop.f32.mrb[0].mxu0
    %272 = vdwg.mxu0
    %v273 = vlaneseq
    %v274 = vshrl.u32 %v273, 7
    %v275 = vsub.s32 0, %v274
    %v276 = vrot.slane %v125, %v275
    %v277 = vadd.f32 %v270, %v276
    %v278 = vtanh.pop %v277
    %v279 = vlaneseq
    %v280 = vshrl.u32 %v279, 7
    %v281 = vsub.s32 0, %v280
    %v282 = vrot.slane %v126, %v281
    %vm283 = vcmask 523264
    %v285 = vsel %vm283, %v278, 0
    %287 = vmatprep.subr.mxu0 0.0
    %288 = vmatpush1.msra.mxu0 %v101
    %289 = vmatprep.subr.mxu0 0.0
    %290 = vmatpush1.msra.mxu0 %v102
    %291 = vmatprep.subr.mxu0 0.0
    %292 = vmatpush1.msra.mxu0 %v103
    %293 = vmatprep.subr.mxu0 0.0
    %294 = vmatpush1.msra.mxu0 %v104
    %295 = vmatprep.subr.mxu0 0.0
    %296 = vmatpush1.msra.mxu0 %v105
    %297 = vmatprep.subr.mxu0 0.0
    %298 = vmatpush1.msra.mxu0 %v106
    %299 = vmatprep.subr.mxu0 0.0
    %300 = vmatpush1.msra.mxu0 %v107
    %301 = vmatprep.subr.mxu0 0.0
    %302 = vmatpush1.msra.mxu0 %v108
    %303 = vmatprep.subr.mxu0 0.0
    %304 = vmatpush1.msra.mxu0 0.0
    %305 = vmatprep.subr.mxu0 0.0
    %306 = vmatpush1.msra.mxu0 0.0
    %307 = vmatprep.subr.mxu0 0.0
    %308 = vmatpush1.msra.mxu0 0.0
    %309 = vmatprep.subr.mxu0 0.0
    %310 = vmatpush1.msra.mxu0 0.0
    %311 = vmatprep.subr.mxu0 0.0
    %312 = vmatpush1.msra.mxu0 0.0
    %313 = vmatprep.subr.mxu0 0.0
    %314 = vmatpush1.msra.mxu0 0.0
    %315 = vmatprep.subr.mxu0 0.0
    %316 = vmatpush1.msra.mxu0 0.0
    %317 = vmatprep.subr.mxu0 0.0
    %318 = vmatpush1.msra.mxu0 0.0
    %319 = vmatprep.subr.mxu0 0.0
    %320 = vmatpush1.msra.mxu0 0.0
    %321 = vmatprep.subr.mxu0 0.0
    %322 = vmatpush1.msra.mxu0 0.0
    %323 = vmatprep.subr.mxu0 0.0
    %324 = vmatpush1.msra.mxu0 0.0
    %325 = vmatprep.subr.mxu0 0.0
    %326 = vmatpush1.msra.mxu0 0.0
    %327 = vmatprep.subr.mxu0 0.0
    %328 = vmatpush1.msra.mxu0 0.0
    %329 = vmatprep.subr.mxu0 0.0
    %330 = vmatpush1.msra.mxu0 0.0
    %331 = vmatprep.subr.mxu0 0.0
    %332 = vmatpush1.msra.mxu0 0.0
    %333 = vmatprep.subr.mxu0 0.0
    %334 = vmatpush1.msra.mxu0 0.0
    %335 = vmatprep.subr.mxu0 0.0
    %336 = vmatpush1.msra.mxu0 0.0
    %337 = vmatprep.subr.mxu0 0.0
    %338 = vmatpush1.msra.mxu0 0.0
    %339 = vmatprep.subr.mxu0 0.0
    %340 = vmatpush1.msra.mxu0 0.0
    %341 = vmatprep.subr.mxu0 0.0
    %342 = vmatpush1.msra.mxu0 0.0
    %343 = vmatprep.subr.mxu0 0.0
    %344 = vmatpush1.msra.mxu0 0.0
    %345 = vmatprep.subr.mxu0 0.0
    %346 = vmatpush1.msra.mxu0 0.0
    %347 = vmatprep.subr.mxu0 0.0
    %348 = vmatpush1.msra.mxu0 0.0
    %349 = vmatprep.subr.mxu0 0.0
    %350 = vmatpush1.msra.mxu0 0.0
    %351 = vmatprep.mubr.f32.mxu0 0.0
    %352 = vmatmul.mubr.f32.gmra.mrb[0].mxu0 %v285
    %v353 = vpop.f32.mrb[0].mxu0
    %v354 = vadd.f32 %v282, %v353
    %v355 = vpop.f32.mrb[0].mxu0
    %356 = vdwg.mxu0
    %357 = vst [vmem:[#allocation11] sm:$0xff] %v354
    %359 = vrot.lane.b32.xlu0 %v200, 64
    %v360 = vpop.permute.xlu0 %359
    %362 = vmatprep.subr.mxu0 0.0
    %363 = vmatpush1.msra.mxu0 %v109
    %364 = vmatprep.subr.mxu0 0.0
    %365 = vmatpush1.msra.mxu0 %v110
    %366 = vmatprep.subr.mxu0 0.0
    %367 = vmatpush1.msra.mxu0 %v111
    %368 = vmatprep.subr.mxu0 0.0
    %369 = vmatpush1.msra.mxu0 %v112
    %370 = vmatprep.subr.mxu0 0.0
    %371 = vmatpush1.msra.mxu0 %v113
    %372 = vmatprep.subr.mxu0 0.0
    %373 = vmatpush1.msra.mxu0 %v114
    %374 = vmatprep.subr.mxu0 0.0
    %375 = vmatpush1.msra.mxu0 %v115
    %376 = vmatprep.subr.mxu0 0.0
    %377 = vmatpush1.msra.mxu0 %v116
    %378 = vmatprep.subr.mxu0 0.0
    %379 = vmatpush1.msra.mxu0 %v117
    %380 = vmatprep.subr.mxu0 0.0
    %381 = vmatpush1.msra.mxu0 %v118
    %382 = vmatprep.subr.mxu0 0.0
    %383 = vmatpush1.msra.mxu0 %v119
    %384 = vmatprep.subr.mxu0 0.0
    %385 = vmatpush1.msra.mxu0 %v120
    %386 = vmatprep.subr.mxu0 0.0
    %387 = vmatpush1.msra.mxu0 %v121
    %388 = vmatprep.subr.mxu0 0.0
    %389 = vmatpush1.msra.mxu0 %v122
    %390 = vmatprep.subr.mxu0 0.0
    %391 = vmatpush1.msra.mxu0 %v123
    %392 = vmatprep.subr.mxu0 0.0
    %393 = vmatpush1.msra.mxu0 %v124
    %394 = vmatprep.subr.mxu0 0.0
    %395 = vmatpush1.msra.mxu0 0.0
    %396 = vmatprep.subr.mxu0 0.0
    %397 = vmatpush1.msra.mxu0 0.0
    %398 = vmatprep.subr.mxu0 0.0
    %399 = vmatpush1.msra.mxu0 0.0
    %400 = vmatprep.subr.mxu0 0.0
    %401 = vmatpush1.msra.mxu0 0.0
    %402 = vmatprep.subr.mxu0 0.0
    %403 = vmatpush1.msra.mxu0 0.0
    %404 = vmatprep.subr.mxu0 0.0
    %405 = vmatpush1.msra.mxu0 0.0
    %406 = vmatprep.subr.mxu0 0.0
    %407 = vmatpush1.msra.mxu0 0.0
    %408 = vmatprep.subr.mxu0 0.0
    %409 = vmatpush1.msra.mxu0 0.0
    %410 = vmatprep.subr.mxu0 0.0
    %411 = vmatpush1.msra.mxu0 0.0
    %412 = vmatprep.subr.mxu0 0.0
    %413 = vmatpush1.msra.mxu0 0.0
    %414 = vmatprep.subr.mxu0 0.0
    %415 = vmatpush1.msra.mxu0 0.0
    %416 = vmatprep.subr.mxu0 0.0
    %417 = vmatpush1.msra.mxu0 0.0
    %418 = vmatprep.subr.mxu0 0.0
    %419 = vmatpush1.msra.mxu0 0.0
    %420 = vmatprep.subr.mxu0 0.0
    %421 = vmatpush1.msra.mxu0 0.0
    %422 = vmatprep.subr.mxu0 0.0
    %423 = vmatpush1.msra.mxu0 0.0
    %424 = vmatprep.subr.mxu0 0.0
    %425 = vmatpush1.msra.mxu0 0.0
    %426 = vmatprep.mubr.f32.mxu0 0.0
    %427 = vmatmul.mubr.f32.gmra.mrb[0].mxu0 %v354
    %v428 = vpop.f32.mrb[0].mxu0
    %v429 = vadd.f32 %v360, %v428
    %v430 = vpop.f32.mrb[0].mxu0
    %431 = vdwg.mxu0
    %v432 = vlaneseq
    %v433 = vshrl.u32 %v432, 7
    %v434 = vsub.s32 0, %v433
    %v435 = vrot.slane %v127, %v434
    %v436 = vadd.f32 %v429, %v435
    %v437 = vtanh.pop %v436
    %v438 = vld [vmem:[#allocation8] sm:$0xff]
    %v439 = vld [vmem:[#allocation8 + $0x8] sm:$0xff]
    %v440 = vld [vmem:[#allocation8 + $0x10] sm:$0xff]
    %v441 = vld [vmem:[#allocation8 + $0x18] sm:$0xff]
    %v442 = vld [vmem:[#allocation8 + $0x20] sm:$0xff]
    %v443 = vld [vmem:[#allocation8 + $0x28] sm:$0xff]
    %v444 = vld [vmem:[#allocation8 + $0x30] sm:$0xff]
    %v445 = vld [vmem:[#allocation8 + $0x38] sm:$0xff]
    %v446 = vlaneseq
    %v447 = vshrl.u32 %v446, 7
    %v448 = vsub.s32 0, %v447
    %v449 = vrot.slane %v128, %v448
    %v451 = vsel %vm283, %v437, 0
    %453 = vmatprep.subr.mxu0 0.0
    %454 = vmatpush1.msra.mxu0 %v438
    %455 = vmatprep.subr.mxu0 0.0
    %456 = vmatpush1.msra.mxu0 %v439
    %457 = vmatprep.subr.mxu0 0.0
    %458 = vmatpush1.msra.mxu0 %v440
    %459 = vmatprep.subr.mxu0 0.0
    %460 = vmatpush1.msra.mxu0 %v441
    %461 = vmatprep.subr.mxu0 0.0
    %462 = vmatpush1.msra.mxu0 %v442
    %463 = vmatprep.subr.mxu0 0.0
    %464 = vmatpush1.msra.mxu0 %v443
    %465 = vmatprep.subr.mxu0 0.0
    %466 = vmatpush1.msra.mxu0 %v444
    %467 = vmatprep.subr.mxu0 0.0
    %468 = vmatpush1.msra.mxu0 %v445
    %469 = vmatprep.subr.mxu0 0.0
    %470 = vmatpush1.msra.mxu0 0.0
    %471 = vmatprep.subr.mxu0 0.0
    %472 = vmatpush1.msra.mxu0 0.0
    %473 = vmatprep.subr.mxu0 0.0
    %474 = vmatpush1.msra.mxu0 0.0
    %475 = vmatprep.subr.mxu0 0.0
    %476 = vmatpush1.msra.mxu0 0.0
    %477 = vmatprep.subr.mxu0 0.0
    %478 = vmatpush1.msra.mxu0 0.0
    %479 = vmatprep.subr.mxu0 0.0
    %480 = vmatpush1.msra.mxu0 0.0
    %481 = vmatprep.subr.mxu0 0.0
    %482 = vmatpush1.msra.mxu0 0.0
    %483 = vmatprep.subr.mxu0 0.0
    %484 = vmatpush1.msra.mxu0 0.0
    %485 = vmatprep.subr.mxu0 0.0
    %486 = vmatpush1.msra.mxu0 0.0
    %487 = vmatprep.subr.mxu0 0.0
    %488 = vmatpush1.msra.mxu0 0.0
    %489 = vmatprep.subr.mxu0 0.0
    %490 = vmatpush1.msra.mxu0 0.0
    %491 = vmatprep.subr.mxu0 0.0
    %492 = vmatpush1.msra.mxu0 0.0
    %493 = vmatprep.subr.mxu0 0.0
    %494 = vmatpush1.msra.mxu0 0.0
    %495 = vmatprep.subr.mxu0 0.0
    %496 = vmatpush1.msra.mxu0 0.0
    %497 = vmatprep.subr.mxu0 0.0
    %498 = vmatpush1.msra.mxu0 0.0
    %499 = vmatprep.subr.mxu0 0.0
    %500 = vmatpush1.msra.mxu0 0.0
    %501 = vmatprep.subr.mxu0 0.0
    %502 = vmatpush1.msra.mxu0 0.0
    %503 = vmatprep.subr.mxu0 0.0
    %504 = vmatpush1.msra.mxu0 0.0
    %505 = vmatprep.subr.mxu0 0.0
    %506 = vmatpush1.msra.mxu0 0.0
    %507 = vmatprep.subr.mxu0 0.0
    %508 = vmatpush1.msra.mxu0 0.0
    %509 = vmatprep.subr.mxu0 0.0
    %510 = vmatpush1.msra.mxu0 0.0
    %511 = vmatprep.subr.mxu0 0.0
    %512 = vmatpush1.msra.mxu0 0.0
    %513 = vmatprep.subr.mxu0 0.0
    %514 = vmatpush1.msra.mxu0 0.0
    %515 = vmatprep.subr.mxu0 0.0
    %516 = vmatpush1.msra.mxu0 0.0
    %517 = vmatprep.mubr.f32.mxu0 0.0
    %518 = vmatmul.mubr.f32.gmra.mrb[0].mxu0 %v451
    %v519 = vpop.f32.mrb[0].mxu0
    %v520 = vadd.f32 %v449, %v519
    %v521 = vpop.f32.mrb[0].mxu0
    %522 = vdwg.mxu0
    %523 = vst [vmem:[#allocation10] sm:$0xff] %v520
    // Predicated region
    $region38: #{tpu_custom_call.1} parent=1 // pred_check
      _
    $region39: #{tpu_custom_call.1} parent=1 // pred_check_branch
      %525 = sbr.rel (0) target = $region41
    $region40: #{tpu_custom_call.1} parent=1 // pred_region
      %s527 = ssub.s32 128, 128
      %528 = vsyncadd [#allocation4], %s527
      %s530 = sshll.u32 [#allocation10], 4
      %s531 = int_to_ptr.vmem [resolvable:$true] %s530
      %533 = dma.vmem_to_hbm [thread:$0]  %s531, 128, %s5, [#allocation4]
    $region41: #{tpu_custom_call.1} parent=1 // pred_fallthru
      _
    // Predicated region
    $region42: #{tpu_custom_call.1} parent=1 // pred_check
      _
    $region43: #{tpu_custom_call.1} parent=1 // pred_check_branch
      %535 = sbr.rel (0) target = $region45
    $region44: #{tpu_custom_call.1} parent=1 // pred_region
      %s537 = ssub.s32 128, 128
      %538 = vsyncadd [#allocation12], %s537
      %s540 = sshll.u32 [#allocation11], 4
      %s541 = int_to_ptr.vmem [resolvable:$true] %s540
      %543 = dma.vmem_to_hbm [thread:$0]  %s541, 128, %s6, [#allocation12]
    $region45: #{tpu_custom_call.1} parent=1 // pred_fallthru
      _
    // Predicated region
    $region46: #{tpu_custom_call.1} parent=1 // pred_check
      _
    $region47: #{tpu_custom_call.1} parent=1 // pred_check_branch
      %545 = sbr.rel (0) target = $region49
    $region48: #{tpu_custom_call.1} parent=1 // pred_region
      %546 = dma.done [#allocation4], 128
    $region49: #{tpu_custom_call.1} parent=1 // pred_fallthru
      _
    // Predicated region
    $region50: #{tpu_custom_call.1} parent=1 // pred_check
      _
    $region51: #{tpu_custom_call.1} parent=1 // pred_check_branch
      %548 = sbr.rel (0) target = $region53
    $region52: #{tpu_custom_call.1} parent=1 // pred_region
      %549 = dma.done [#allocation12], 128
    $region53: #{tpu_custom_call.1} parent=1 // pred_fallthru
      _
    %550 = vsyncpa [#allocation3], 1
    %551 = vsyncpa [#allocation6], 1
    %552 = vsyncpa [#allocation9], 1
    %553 = vsyncpa [#allocation4], 1
    %554 = vsyncpa [#allocation12], 1

</llo_original>
